<compile_context>
chip_gen: v5e
topology: v5e:2x2
jax: 0.10.0
libtpu: 0.0.40
codegen_flags: <defaults>
</compile_context>

<pallas_src>
import jax
import jax.numpy as jnp
from jax.experimental import pallas as pl
from jax.experimental.pallas import tpu as pltpu

HIDDEN = 128
LANE = 128


def _round_up(n, m):
    return ((n + m - 1) // m) * m


def _dqn_kernel(x_ref, w1_ref, b1_ref, w2_ref, b2_ref, w3_ref, b3_ref, o_ref):
    # One (tm, d_in) f32 activation tile per grid step; weights stay VMEM-resident.
    x = x_ref[...].astype(jnp.bfloat16)  # fused cast: f32 HBM stream -> bf16 MXU operand
    h1 = jnp.dot(x, w1_ref[...], preferred_element_type=jnp.float32) + b1_ref[...]
    h1 = jnp.maximum(h1, 0.0).astype(jnp.bfloat16)      # ReLU in f32 (v5e-safe), recast for MXU
    h2 = jnp.dot(h1, w2_ref[...], preferred_element_type=jnp.float32) + b2_ref[...]
    h2 = jnp.maximum(h2, 0.0).astype(jnp.bfloat16)
    q = jnp.dot(h2, w3_ref[...], preferred_element_type=jnp.float32) + b3_ref[...]
    o_ref[...] = q.astype(o_ref.dtype)                   # lane-dense (tm, 128) store


def init_dqn_params(key, input_dim, output_dim, hidden=HIDDEN):
    """f32 master params mimicking PyTorch nn.Linear default init, stored as (in, out)."""
    ks = jax.random.split(key, 6)

    def linear(kw, kb, fan_in, fan_out):
        bound = 1.0 / jnp.sqrt(jnp.float32(fan_in))
        w = jax.random.uniform(kw, (fan_in, fan_out), jnp.float32, -bound, bound)
        b = jax.random.uniform(kb, (fan_out,), jnp.float32, -bound, bound)
        return w, b

    w1, b1 = linear(ks[0], ks[1], input_dim, hidden)
    w2, b2 = linear(ks[2], ks[3], hidden, hidden)
    w3, b3 = linear(ks[4], ks[5], hidden, output_dim)
    return {"w1": w1, "b1": b1, "w2": w2, "b2": b2, "w3": w3, "b3": b3}


def pack_dqn_params(params):
    """One-time packing: cast weights to bf16, pad only the OUTPUT feature dim to 128 lanes.

    d_in is left unpadded (the x/w1 blocks use the full small dim). Zero padding of the
    extra output columns is mathematically inert and sliced off in the wrapper.
    """
    w1, b1 = params["w1"], params["b1"]
    w2, b2 = params["w2"], params["b2"]
    w3, b3 = params["w3"], params["b3"]
    h = w1.shape[1]
    d_out = w3.shape[1]
    d_out_p = _round_up(d_out, LANE)

    w3p = jnp.zeros((h, d_out_p), jnp.bfloat16).at[:, :d_out].set(w3.astype(jnp.bfloat16))
    b3p = jnp.zeros((1, d_out_p), jnp.float32).at[0, :d_out].set(b3.astype(jnp.float32))
    return {
        "w1": w1.astype(jnp.bfloat16),
        "b1": b1.reshape(1, -1).astype(jnp.float32),
        "w2": w2.astype(jnp.bfloat16),
        "b2": b2.reshape(1, -1).astype(jnp.float32),
        "w3": w3p,
        "b3": b3p,
    }


def _choose_tiling(B, max_tm=512):
    """Pick (tile_rows, num_tiles).

    - Tiles as large as possible (<= max_tm rows) to amortize ~0.35us/step overhead.
    - Keep an EVEN number of tiles >= 2 whenever B > 8 so the 'parallel' batch axis
      shards evenly across both v7x TensorCores (no-op on 1-TC v5e/v6e).
    - Tile rows are a multiple of 8 (sublane).
    VMEM is never the constraint here (even tm=2048 is a few MB vs 64+ MiB).
    """
    if B <= 8:
        return _round_up(max(B, 1), 8), 1
    n = max(2, pl.cdiv(B, max_tm))
    n += n % 2                      # balanced split across 2 TensorCores on v7x
    tm = _round_up(pl.cdiv(B, n), 8)
    return tm, n


def dqn_forward(x, packed, d_out, *, max_tm=512, out_dtype=jnp.float32):
    """x: (B, input_dim) float32. packed: output of pack_dqn_params. Returns (B, d_out) out_dtype.

    out_dtype=jnp.bfloat16 halves output HBM writeback (the dominant bytes term at
    large replay batches); f32 default preserves the PyTorch module's output dtype.
    """
    B, d_in = x.shape
    d_in_w, h = packed["w1"].shape
    assert d_in == d_in_w, "input feature dim mismatch with packed params"
    d_out_p = packed["w3"].shape[1]

    tm, n_tiles = _choose_tiling(B, max_tm)
    b_p = tm * n_tiles
    # Batch-only padding (no feature padding, no dtype cast) -> tiny or zero extra work.
    x_p = x if b_p == B else jnp.pad(x, ((0, b_p - B), (0, 0)))

    const = lambda i: (0, 0)  # weights/biases: same block every step -> VMEM-resident

    flops = 2 * b_p * (d_in * h + h * h + h * d_out_p)
    bytes_accessed = int(
        b_p * d_in * 4                                        # activation stream (f32)
        + b_p * d_out_p * jnp.dtype(out_dtype).itemsize       # output writeback
        + sum(int(v.size) * v.dtype.itemsize for v in packed.values())  # weights (once)
    )

    out = pl.pallas_call(
        _dqn_kernel,
        out_shape=jax.ShapeDtypeStruct((b_p, d_out_p), out_dtype),
        grid=(n_tiles,),
        in_specs=[
            pl.BlockSpec((tm, d_in), lambda i: (i, 0)),   # activation stream, unpadded d_in
            pl.BlockSpec((d_in, h), const),
            pl.BlockSpec((1, h), const),
            pl.BlockSpec((h, h), const),
            pl.BlockSpec((1, h), const),
            pl.BlockSpec((h, d_out_p), const),
            pl.BlockSpec((1, d_out_p), const),
        ],
        out_specs=pl.BlockSpec((tm, d_out_p), lambda i: (i, 0)),  # lane-dense 128-wide store
        compiler_params=pltpu.CompilerParams(
            dimension_semantics=("parallel",),            # megacore sharding on v7x
        ),
        cost_estimate=pl.CostEstimate(
            flops=flops, transcendentals=0, bytes_accessed=bytes_accessed),
    )(x_p, packed["w1"], packed["b1"], packed["w2"], packed["b2"],
      packed["w3"], packed["b3"])
    return out[:B, :d_out]


def dqn_reference(x, p, cast=None):
    """Pure-JAX reference. cast=jnp.bfloat16 mimics the kernel's operand precision."""
    def c(a):
        return a.astype(cast).astype(jnp.float32) if cast is not None else a
    h1 = jnp.maximum(jnp.dot(c(x), c(p["w1"])) + p["b1"], 0.0)
    h2 = jnp.maximum(jnp.dot(c(h1), c(p["w2"])) + p["b2"], 0.0)
    return jnp.dot(c(h2), c(p["w3"])) + p["b3"]


if __name__ == "__main__":
    key = jax.random.PRNGKey(0)
    k_x, k_p = jax.random.split(key)

    # Small DQN replay minibatch; tiling heuristic yields 2 balanced grid steps.
    batch, input_dim, output_dim = 64, 16, 4
    x = jax.random.normal(k_x, (batch, input_dim), jnp.float32)

    params = init_dqn_params(k_p, input_dim, output_dim)
    packed = pack_dqn_params(params)  # bf16-cast + output-lane pad once, reuse every step

    out = dqn_forward(x, packed, output_dim)
    out = jax.block_until_ready(out)
    assert out.shape == (batch, output_dim)
    assert out.dtype == jnp.float32

    # Tight check vs. a reference at the kernel's precision (bf16 operands, f32 accumulate).
    ref_bf16 = dqn_reference(x, params, cast=jnp.bfloat16)
    assert jnp.allclose(out, ref_bf16, atol=2e-3, rtol=2e-3), "mismatch vs bf16-operand reference"

    # Loose sanity check vs. the pure-f32 PyTorch-equivalent forward.
    ref_f32 = dqn_reference(x, params, cast=None)
    assert jnp.allclose(out, ref_f32, atol=5e-2, rtol=5e-2), "mismatch vs f32 reference"

    print("KERNEL_OK")
</pallas_src>

<mosaic_0001>
module attributes {stable_mosaic.version = 11 : i64} {
  func.func @_dqn_kernel(%arg0: i32, %arg1: memref<32x16xf32, #tpu.memory_space<vmem>>, %arg2: memref<16x128xbf16, #tpu.memory_space<vmem>>, %arg3: memref<1x128xf32, #tpu.memory_space<vmem>>, %arg4: memref<128x128xbf16, #tpu.memory_space<vmem>>, %arg5: memref<1x128xf32, #tpu.memory_space<vmem>>, %arg6: memref<128x128xbf16, #tpu.memory_space<vmem>>, %arg7: memref<1x128xf32, #tpu.memory_space<vmem>>, %arg8: memref<32x128xf32, #tpu.memory_space<vmem>>) attributes {dimension_semantics = [#tpu.dimension_semantics<parallel>], iteration_bounds = array<i64: 2>, scalar_prefetch = 0 : i64, scratch_operands = 0 : i64, tpu.core_type = #tpu.core_type<tc>, window_params = [{transform_indices = @transform_0, window_bounds = array<i64: 32, 16>}, {pipeline_mode = #tpu.pipeline_mode<synchronous>, transform_indices = @transform_1, window_bounds = array<i64: 16, 128>}, {pipeline_mode = #tpu.pipeline_mode<synchronous>, transform_indices = @transform_2, window_bounds = array<i64: 1, 128>}, {pipeline_mode = #tpu.pipeline_mode<synchronous>, transform_indices = @transform_3, window_bounds = array<i64: 128, 128>}, {pipeline_mode = #tpu.pipeline_mode<synchronous>, transform_indices = @transform_4, window_bounds = array<i64: 1, 128>}, {pipeline_mode = #tpu.pipeline_mode<synchronous>, transform_indices = @transform_5, window_bounds = array<i64: 128, 128>}, {pipeline_mode = #tpu.pipeline_mode<synchronous>, transform_indices = @transform_6, window_bounds = array<i64: 1, 128>}, {transform_indices = @transform_7, window_bounds = array<i64: 32, 128>}]} {
    %c0 = arith.constant 0 : index
    %c0_0 = arith.constant 0 : index
    %0 = vector.load %arg1[%c0, %c0_0] : memref<32x16xf32, #tpu.memory_space<vmem>>, vector<32x16xf32>
    %1 = arith.truncf %0 : vector<32x16xf32> to vector<32x16xbf16>
    %c0_1 = arith.constant 0 : index
    %c0_2 = arith.constant 0 : index
    %2 = vector.load %arg2[%c0_1, %c0_2] : memref<16x128xbf16, #tpu.memory_space<vmem>>, vector<16x128xbf16>
    %cst = arith.constant dense<0.000000e+00> : vector<32x128xf32>
    %3 = tpu.matmul %1, %2, %cst {dimension_numbers = #tpu.dot_dimension_numbers<[1], [0], [0], [1], [0, 0, 1, 1], [], []>} : vector<32x16xbf16>, vector<16x128xbf16>, vector<32x128xf32> -> vector<32x128xf32>
    %c0_3 = arith.constant 0 : index
    %c0_4 = arith.constant 0 : index
    %4 = vector.load %arg3[%c0_3, %c0_4] : memref<1x128xf32, #tpu.memory_space<vmem>>, vector<1x128xf32>
    %5 = vector.broadcast %4 : vector<1x128xf32> to vector<32x128xf32>
    %6 = arith.addf %3, %5 : vector<32x128xf32>
    %cst_5 = arith.constant 0.000000e+00 : f32
    %7 = vector.broadcast %cst_5 : f32 to vector<32x128xf32>
    %8 = arith.maximumf %6, %7 : vector<32x128xf32>
    %9 = arith.truncf %8 : vector<32x128xf32> to vector<32x128xbf16>
    %c0_6 = arith.constant 0 : index
    %c0_7 = arith.constant 0 : index
    %10 = vector.load %arg4[%c0_6, %c0_7] : memref<128x128xbf16, #tpu.memory_space<vmem>>, vector<128x128xbf16>
    %cst_8 = arith.constant dense<0.000000e+00> : vector<32x128xf32>
    %11 = tpu.matmul %9, %10, %cst_8 {dimension_numbers = #tpu.dot_dimension_numbers<[1], [0], [0], [1], [0, 0, 1, 1], [], []>} : vector<32x128xbf16>, vector<128x128xbf16>, vector<32x128xf32> -> vector<32x128xf32>
    %c0_9 = arith.constant 0 : index
    %c0_10 = arith.constant 0 : index
    %12 = vector.load %arg5[%c0_9, %c0_10] : memref<1x128xf32, #tpu.memory_space<vmem>>, vector<1x128xf32>
    %13 = vector.broadcast %12 : vector<1x128xf32> to vector<32x128xf32>
    %14 = arith.addf %11, %13 : vector<32x128xf32>
    %cst_11 = arith.constant 0.000000e+00 : f32
    %15 = vector.broadcast %cst_11 : f32 to vector<32x128xf32>
    %16 = arith.maximumf %14, %15 : vector<32x128xf32>
    %17 = arith.truncf %16 : vector<32x128xf32> to vector<32x128xbf16>
    %c0_12 = arith.constant 0 : index
    %c0_13 = arith.constant 0 : index
    %18 = vector.load %arg6[%c0_12, %c0_13] : memref<128x128xbf16, #tpu.memory_space<vmem>>, vector<128x128xbf16>
    %cst_14 = arith.constant dense<0.000000e+00> : vector<32x128xf32>
    %19 = tpu.matmul %17, %18, %cst_14 {dimension_numbers = #tpu.dot_dimension_numbers<[1], [0], [0], [1], [0, 0, 1, 1], [], []>} : vector<32x128xbf16>, vector<128x128xbf16>, vector<32x128xf32> -> vector<32x128xf32>
    %c0_15 = arith.constant 0 : index
    %c0_16 = arith.constant 0 : index
    %20 = vector.load %arg7[%c0_15, %c0_16] : memref<1x128xf32, #tpu.memory_space<vmem>>, vector<1x128xf32>
    %21 = vector.broadcast %20 : vector<1x128xf32> to vector<32x128xf32>
    %22 = arith.addf %19, %21 : vector<32x128xf32>
    %c0_17 = arith.constant 0 : index
    %c0_18 = arith.constant 0 : index
    %23 = vector.load %arg8[%c0_17, %c0_18] : memref<32x128xf32, #tpu.memory_space<vmem>>, vector<32x128xf32>
    tpu.vector_store %arg8[%c0_17, %c0_18], %22 {strides = array<i32>} : memref<32x128xf32, #tpu.memory_space<vmem>>, vector<32x128xf32>,
    return
  }
  func.func @transform_0(%arg0: i32) -> (i32, i32) {
    %c0_i32 = arith.constant 0 : i32
    %c0_i32_0 = arith.constant 0 : i32
    return %arg0, %c0_i32 : i32, i32
  }
  func.func @transform_1(%arg0: i32) -> (i32, i32) {
    %c0_i32 = arith.constant 0 : i32
    %c0_i32_0 = arith.constant 0 : i32
    %c0_i32_1 = arith.constant 0 : i32
    return %c0_i32, %c0_i32_0 : i32, i32
  }
  func.func @transform_2(%arg0: i32) -> (i32, i32) {
    %c0_i32 = arith.constant 0 : i32
    %c0_i32_0 = arith.constant 0 : i32
    %c0_i32_1 = arith.constant 0 : i32
    return %c0_i32, %c0_i32_0 : i32, i32
  }
  func.func @transform_3(%arg0: i32) -> (i32, i32) {
    %c0_i32 = arith.constant 0 : i32
    %c0_i32_0 = arith.constant 0 : i32
    %c0_i32_1 = arith.constant 0 : i32
    return %c0_i32, %c0_i32_0 : i32, i32
  }
  func.func @transform_4(%arg0: i32) -> (i32, i32) {
    %c0_i32 = arith.constant 0 : i32
    %c0_i32_0 = arith.constant 0 : i32
    %c0_i32_1 = arith.constant 0 : i32
    return %c0_i32, %c0_i32_0 : i32, i32
  }
  func.func @transform_5(%arg0: i32) -> (i32, i32) {
    %c0_i32 = arith.constant 0 : i32
    %c0_i32_0 = arith.constant 0 : i32
    %c0_i32_1 = arith.constant 0 : i32
    return %c0_i32, %c0_i32_0 : i32, i32
  }
  func.func @transform_6(%arg0: i32) -> (i32, i32) {
    %c0_i32 = arith.constant 0 : i32
    %c0_i32_0 = arith.constant 0 : i32
    %c0_i32_1 = arith.constant 0 : i32
    return %c0_i32, %c0_i32_0 : i32, i32
  }
  func.func @transform_7(%arg0: i32) -> (i32, i32) {
    %c0_i32 = arith.constant 0 : i32
    %c0_i32_0 = arith.constant 0 : i32
    return %arg0, %c0_i32 : i32, i32
  }
}

</mosaic_0001>

<llo_original>
// kernel: tpu_custom_call.1
$region0: #{tpu_custom_call.1}
  #allocation0 [shape = 'u32[]', space=smem, size = 0x4, offset = 0x4, fixed_abs, tag = 'smem constant byte address 0x4 - core index']
  #allocation1 [shape = 'u32[72,128]{1,0:T(1,128)}', space=vmem, size = 0x9000, scoped, tag = 'internal scratch']
  %s0 = inlined_call_operand.vmem [shape: f32[64,16], index: 0, kind: input, shape index: {}]
  %s1 = inlined_call_operand.vmem [shape: bf16[16,128], index: 1, kind: input, shape index: {}]
  %s2 = inlined_call_operand.vmem [shape: f32[1,128], index: 2, kind: input, shape index: {}]
  %s3 = inlined_call_operand.vmem [shape: bf16[128,128], index: 3, kind: input, shape index: {}]
  %s4 = inlined_call_operand.vmem [shape: f32[1,128], index: 4, kind: input, shape index: {}]
  %s5 = inlined_call_operand.hbm [shape: bf16[128,128], index: 5, kind: input, shape index: {}]
  %s6 = inlined_call_operand.vmem [shape: f32[1,128], index: 6, kind: input, shape index: {}]
  %s7 = inlined_call_operand.hbm [shape: f32[64,128], index: 7, kind: output, shape index: {}]
  %s8 = sld [smem:[#allocation0]]
  $region65: #{tpu_custom_call.1} parent=0
    _
  %s10 = ssub.s32 1, %s8
  %s11 = scalar_select 0, %s10, %s8
  $region1: #{tpu_custom_call.1} parent=0
    #allocation2 [shape = 'u8[32768]{0}', space=vmem, size = 0x8000, scoped, tag = 'input window, operand 5, single buffered']
    #allocation3 [shape = 's32[2]{0}', space=sflag, size = 0x8, scoped, tag = 'scoped memory for tpu_custom_call.1']
    #allocation4 [shape = 's32[2]{0}', space=sflag, size = 0x8, scoped, tag = 'scoped memory for tpu_custom_call.1']
    #allocation5 [shape = 'u8[32768]{0}', space=vmem, size = 0x8000, scoped, tag = 'output window, operand 0']
    %12 = vsyncpa [#allocation3], 0
    %13 = vsyncpa [#allocation4], 0
    %s14 = scalar_lea.sflag [#allocation4], 1
    %15 = vsyncpa %s14, 0
    loop: start=0, step=1, limit=4
    $region2: #{tpu_custom_call.1} parent=1 // loop_pre_header
      _
    $region3: #{tpu_custom_call.1} parent=1 // loop_header
      %s17 = sphi 0, %s21
      %p18 = scmp.ge.s32.totalorder %s17, 4
      %s27 = sphi 0, %s29
      %s30 = sphi 0, %s27
      %s31 = sphi 0, %s30
      %s47 = sphi 0, %s31
      %s51 = sphi 0, %s51
      %s53 = sphi 0, %s51
      %s54 = sphi 0, %s53
      %s68 = sphi 0, %s54
      %s72 = sphi 0, %s72
      %s74 = sphi 0, %s72
      %s75 = sphi 0, %s74
      %s89 = sphi 0, %s75
      %s93 = sphi 0, %s93
      %s95 = sphi 0, %s93
      %s96 = sphi 0, %s95
      %s110 = sphi 0, %s96
      %s114 = sphi 0, %s114
      %s116 = sphi 0, %s114
      %s117 = sphi 0, %s116
      %s131 = sphi 0, %s117
      %s135 = sphi 0, %s135
      %s137 = sphi 0, %s135
      %s138 = sphi 0, %s137
      %s152 = sphi 0, %s138
      %s156 = sphi 0, %s156
      %s158 = sphi 0, %s156
      %s159 = sphi 0, %s158
      %s173 = sphi 0, %s159
      %s179 = sphi 0, %s181
      %s182 = sphi 0, %s179
      %s183 = sphi 0, %s182
      %s199 = sphi 0, %s183
    $region4: #{tpu_custom_call.1} parent=1 // loop_header_branch
      %20 = sbr.rel (%p18) target = $region8
    $region5: #{tpu_custom_call.1} parent=1 // loop_body
      %s22 = ssub.s32 %s17, 1
      %s23 = ssub.s32 %s17, 2
      %s24 = sadd.s32 %s17, 1
      %s25 = ssub.s32 %s17, %s24
      %p26 = scmp.eq.s32.totalorder %s25, 0
      %s28 = sadd.s32 %s27, 1
      %s29 = scalar_select %p26, %s27, %s28
      %p32 = pneg %p26
      %p33 = scmp.eq.s32.totalorder %s17, 1
      %p34 = por %p32, %p33
      %p35 = scmp.ne.s32.totalorder %s27, %s30
      %p36 = scmp.eq.s32.totalorder %s17, 0
      %p37 = por %p35, %p36
      %p38 = scmp.ne.s32.totalorder %s27, %s30
      %p39 = scmp.eq.s32.totalorder %s22, 1
      %p40 = por %p38, %p39
      %p41 = scmp.ne.s32.totalorder %s30, %s31
      %p42 = scmp.eq.s32.totalorder %s22, 0
      %p43 = por %p41, %p42
      %p44 = scmp.ne.s32.totalorder %s30, %s31
      %p45 = scmp.eq.s32.totalorder %s23, 1
      %p46 = por %p44, %p45
      %p48 = scmp.ne.s32.totalorder %s31, %s47
      %p49 = scmp.eq.s32.totalorder %s23, 0
      %p50 = por %p48, %p49
      %s52 = sadd.s32 %s51, 1
      %p55 = scmp.eq.s32.totalorder %s17, 1
      %p56 = scmp.ne.s32.totalorder %s51, %s53
      %p57 = scmp.eq.s32.totalorder %s17, 0
      %p58 = por %p56, %p57
      %p59 = scmp.ne.s32.totalorder %s51, %s53
      %p60 = scmp.eq.s32.totalorder %s22, 1
      %p61 = por %p59, %p60
      %p62 = scmp.ne.s32.totalorder %s53, %s54
      %p63 = scmp.eq.s32.totalorder %s22, 0
      %p64 = por %p62, %p63
      %p65 = scmp.ne.s32.totalorder %s53, %s54
      %p66 = scmp.eq.s32.totalorder %s23, 1
      %p67 = por %p65, %p66
      %p69 = scmp.ne.s32.totalorder %s54, %s68
      %p70 = scmp.eq.s32.totalorder %s23, 0
      %p71 = por %p69, %p70
      %s73 = sadd.s32 %s72, 1
      %p76 = scmp.eq.s32.totalorder %s17, 1
      %p77 = scmp.ne.s32.totalorder %s72, %s74
      %p78 = scmp.eq.s32.totalorder %s17, 0
      %p79 = por %p77, %p78
      %p80 = scmp.ne.s32.totalorder %s72, %s74
      %p81 = scmp.eq.s32.totalorder %s22, 1
      %p82 = por %p80, %p81
      %p83 = scmp.ne.s32.totalorder %s74, %s75
      %p84 = scmp.eq.s32.totalorder %s22, 0
      %p85 = por %p83, %p84
      %p86 = scmp.ne.s32.totalorder %s74, %s75
      %p87 = scmp.eq.s32.totalorder %s23, 1
      %p88 = por %p86, %p87
      %p90 = scmp.ne.s32.totalorder %s75, %s89
      %p91 = scmp.eq.s32.totalorder %s23, 0
      %p92 = por %p90, %p91
      %s94 = sadd.s32 %s93, 1
      %p97 = scmp.eq.s32.totalorder %s17, 1
      %p98 = scmp.ne.s32.totalorder %s93, %s95
      %p99 = scmp.eq.s32.totalorder %s17, 0
      %p100 = por %p98, %p99
      %p101 = scmp.ne.s32.totalorder %s93, %s95
      %p102 = scmp.eq.s32.totalorder %s22, 1
      %p103 = por %p101, %p102
      %p104 = scmp.ne.s32.totalorder %s95, %s96
      %p105 = scmp.eq.s32.totalorder %s22, 0
      %p106 = por %p104, %p105
      %p107 = scmp.ne.s32.totalorder %s95, %s96
      %p108 = scmp.eq.s32.totalorder %s23, 1
      %p109 = por %p107, %p108
      %p111 = scmp.ne.s32.totalorder %s96, %s110
      %p112 = scmp.eq.s32.totalorder %s23, 0
      %p113 = por %p111, %p112
      %s115 = sadd.s32 %s114, 1
      %p118 = scmp.eq.s32.totalorder %s17, 1
      %p119 = scmp.ne.s32.totalorder %s114, %s116
      %p120 = scmp.eq.s32.totalorder %s17, 0
      %p121 = por %p119, %p120
      %p122 = scmp.ne.s32.totalorder %s114, %s116
      %p123 = scmp.eq.s32.totalorder %s22, 1
      %p124 = por %p122, %p123
      %p125 = scmp.ne.s32.totalorder %s116, %s117
      %p126 = scmp.eq.s32.totalorder %s22, 0
      %p127 = por %p125, %p126
      %p128 = scmp.ne.s32.totalorder %s116, %s117
      %p129 = scmp.eq.s32.totalorder %s23, 1
      %p130 = por %p128, %p129
      %p132 = scmp.ne.s32.totalorder %s117, %s131
      %p133 = scmp.eq.s32.totalorder %s23, 0
      %p134 = por %p132, %p133
      %s136 = sadd.s32 %s135, 1
      %p139 = scmp.eq.s32.totalorder %s17, 1
      %p140 = scmp.ne.s32.totalorder %s135, %s137
      %p141 = scmp.eq.s32.totalorder %s17, 0
      %p142 = por %p140, %p141
      %p143 = scmp.ne.s32.totalorder %s135, %s137
      %p144 = scmp.eq.s32.totalorder %s22, 1
      %p145 = por %p143, %p144
      %p146 = scmp.ne.s32.totalorder %s137, %s138
      %p147 = scmp.eq.s32.totalorder %s22, 0
      %p148 = por %p146, %p147
      %p149 = scmp.ne.s32.totalorder %s137, %s138
      %p150 = scmp.eq.s32.totalorder %s23, 1
      %p151 = por %p149, %p150
      %p153 = scmp.ne.s32.totalorder %s138, %s152
      %p154 = scmp.eq.s32.totalorder %s23, 0
      %p155 = por %p153, %p154
      %s157 = sadd.s32 %s156, 1
      %p160 = scmp.eq.s32.totalorder %s17, 1
      %p161 = scmp.ne.s32.totalorder %s156, %s158
      %p162 = scmp.eq.s32.totalorder %s17, 0
      %p163 = por %p161, %p162
      %p164 = scmp.ne.s32.totalorder %s156, %s158
      %p165 = scmp.eq.s32.totalorder %s22, 1
      %p166 = por %p164, %p165
      %p167 = scmp.ne.s32.totalorder %s158, %s159
      %p168 = scmp.eq.s32.totalorder %s22, 0
      %p169 = por %p167, %p168
      %p170 = scmp.ne.s32.totalorder %s158, %s159
      %p171 = scmp.eq.s32.totalorder %s23, 1
      %p172 = por %p170, %p171
      %p174 = scmp.ne.s32.totalorder %s159, %s173
      %p175 = scmp.eq.s32.totalorder %s23, 0
      %p176 = por %p174, %p175
      %s177 = ssub.s32 %s17, %s24
      %p178 = scmp.eq.s32.totalorder %s177, 0
      %s180 = sadd.s32 %s179, 1
      %s181 = scalar_select %p178, %s179, %s180
      %p184 = pneg %p178
      %p185 = scmp.eq.s32.totalorder %s17, 1
      %p186 = por %p184, %p185
      %p187 = scmp.ne.s32.totalorder %s179, %s182
      %p188 = scmp.eq.s32.totalorder %s17, 0
      %p189 = por %p187, %p188
      %p190 = scmp.ne.s32.totalorder %s179, %s182
      %p191 = scmp.eq.s32.totalorder %s22, 1
      %p192 = por %p190, %p191
      %p193 = scmp.ne.s32.totalorder %s182, %s183
      %p194 = scmp.eq.s32.totalorder %s22, 0
      %p195 = por %p193, %p194
      %p196 = scmp.ne.s32.totalorder %s182, %s183
      %p197 = scmp.eq.s32.totalorder %s23, 1
      %p198 = por %p196, %p197
      %p200 = scmp.ne.s32.totalorder %s183, %s199
      %p201 = scmp.eq.s32.totalorder %s23, 0
      %p202 = por %p200, %p201
      %p203 = scmp.le.s32.totalorder 1, %s17
      %p204 = scmp.lt.s32.totalorder %s17, 3
      %p205 = pnand %p203, %p204
      %p206 = pneg %p205
      // Predicated region
      $region9: #{tpu_custom_call.1} parent=5 // pred_check
        _
      $region10: #{tpu_custom_call.1} parent=5 // pred_check_branch
        %208 = sbr.rel (%p205) target = $region12
      $region11: #{tpu_custom_call.1} parent=5 // pred_region
        %s209 = ssub.s32 %s17, 1
        // Predicated region
        $region13: #{tpu_custom_call.1} parent=11 // pred_check
          %p210 = pneg %p64
        $region14: #{tpu_custom_call.1} parent=11 // pred_check_branch
          %212 = sbr.rel (%p210) target = $region16
        $region15: #{tpu_custom_call.1} parent=11 // pred_region
          _
        $region16: #{tpu_custom_call.1} parent=11 // pred_fallthru
          _
        // Predicated region
        $region17: #{tpu_custom_call.1} parent=11 // pred_check
          %p213 = pneg %p85
        $region18: #{tpu_custom_call.1} parent=11 // pred_check_branch
          %215 = sbr.rel (%p213) target = $region20
        $region19: #{tpu_custom_call.1} parent=11 // pred_region
          _
        $region20: #{tpu_custom_call.1} parent=11 // pred_fallthru
          _
        // Predicated region
        $region21: #{tpu_custom_call.1} parent=11 // pred_check
          %p216 = pneg %p106
        $region22: #{tpu_custom_call.1} parent=11 // pred_check_branch
          %218 = sbr.rel (%p216) target = $region24
        $region23: #{tpu_custom_call.1} parent=11 // pred_region
          _
        $region24: #{tpu_custom_call.1} parent=11 // pred_fallthru
          _
        // Predicated region
        $region25: #{tpu_custom_call.1} parent=11 // pred_check
          %p219 = pneg %p127
        $region26: #{tpu_custom_call.1} parent=11 // pred_check_branch
          %221 = sbr.rel (%p219) target = $region28
        $region27: #{tpu_custom_call.1} parent=11 // pred_region
          _
        $region28: #{tpu_custom_call.1} parent=11 // pred_fallthru
          _
        // Predicated region
        $region29: #{tpu_custom_call.1} parent=11 // pred_check
          %p222 = pneg %p148
        $region30: #{tpu_custom_call.1} parent=11 // pred_check_branch
          %224 = sbr.rel (%p222) target = $region32
        $region31: #{tpu_custom_call.1} parent=11 // pred_region
          %226 = vsyncadd [#allocation3], 0
          %s227 = sshll.u32 %s5, 4
          %s228 = int_to_ptr.hbm [resolvable:$true] %s227
          %s229 = sshll.u32 [#allocation2], 4
          %s230 = int_to_ptr.vmem [resolvable:$true] %s229
          %235 = dma.hbm_to_vmem [thread:$0]  %s228, 1024, %s230, [#allocation3], 64, 64, 4
        $region32: #{tpu_custom_call.1} parent=11 // pred_fallthru
          _
        // Predicated region
        $region33: #{tpu_custom_call.1} parent=11 // pred_check
          %p236 = pneg %p169
        $region34: #{tpu_custom_call.1} parent=11 // pred_check_branch
          %238 = sbr.rel (%p236) target = $region36
        $region35: #{tpu_custom_call.1} parent=11 // pred_region
          _
        $region36: #{tpu_custom_call.1} parent=11 // pred_fallthru
          _
      $region12: #{tpu_custom_call.1} parent=5 // pred_fallthru
        _
      %p239 = scmp.lt.s32.totalorder %s17, 2
      // Predicated region
      $region37: #{tpu_custom_call.1} parent=5 // pred_check
        %p240 = pneg %p239
      $region38: #{tpu_custom_call.1} parent=5 // pred_check_branch
        %242 = sbr.rel (%p240) target = $region40
      $region39: #{tpu_custom_call.1} parent=5 // pred_region
        // Predicated region
        $region41: #{tpu_custom_call.1} parent=39 // pred_check
          %p243 = pneg %p37
        $region42: #{tpu_custom_call.1} parent=39 // pred_check_branch
          %245 = sbr.rel (%p243) target = $region44
        $region43: #{tpu_custom_call.1} parent=39 // pred_region
          %s246 = smul.u32 4, %s17
          %p247 = scmp.lt.s32.totalorder %s246, 7
          %s248 = scalar_select %p247, %s246, 7
          %s249 = smul.addr %s248, 8
          %s250 = scalar_lea.vmem %s0, %s249
          %s251 = smul.u32 4, %s17
        $region44: #{tpu_custom_call.1} parent=39 // pred_fallthru
          _
      $region40: #{tpu_custom_call.1} parent=5 // pred_fallthru
        _
      %p252 = scmp.le.s32.totalorder 1, %s17
      %p253 = scmp.lt.s32.totalorder %s17, 3
      %p254 = pnand %p252, %p253
      %p255 = pneg %p254
      // Predicated region
      $region45: #{tpu_custom_call.1} parent=5 // pred_check
        _
      $region46: #{tpu_custom_call.1} parent=5 // pred_check_branch
        %257 = sbr.rel (%p254) target = $region48
      $region47: #{tpu_custom_call.1} parent=5 // pred_region
        %s258 = ssub.s32 %s17, 1
        // Predicated region
        $region49: #{tpu_custom_call.1} parent=47 // pred_check
          %p259 = pneg %p148
        $region50: #{tpu_custom_call.1} parent=47 // pred_check_branch
          %261 = sbr.rel (%p259) target = $region52
        $region51: #{tpu_custom_call.1} parent=47 // pred_region
          %263 = dma.done [#allocation3], 1024
        $region52: #{tpu_custom_call.1} parent=47 // pred_fallthru
          _
        %s264 = smul.u32 4, %s22
        %p265 = scmp.lt.s32.totalorder %s264, 7
        %s266 = scalar_select %p265, %s264, 7
        %s267 = smul.addr %s266, 8
        %s268 = scalar_lea.vmem %s0, %s267
        %p269 = pneg %p43
        %p270 = pneg %p40
        %p271 = pneg %p64
        %p272 = pneg %p61
        %p273 = pneg %p85
        %p274 = pneg %p82
        %p275 = pneg %p106
        %p276 = pneg %p103
        %p277 = pneg %p127
        %p278 = pneg %p124
        %p279 = pneg %p148
        %p280 = pneg %p145
        %p281 = pneg %p169
        %p282 = pneg %p166
        %p283 = pneg %p195
        %p284 = pneg %p192
        %s285 = sand.u32 %s182, 1
        %s286 = scalar_lea.sflag [#allocation4], %s285
        %s287 = sand.u32 %s182, 1
        %s288 = smul.addr %s287, 32
        %s289 = scalar_lea.vmem [#allocation5], %s288
        %s290 = smul.u32 4, %s22
        %p291 = scmp.lt.s32.totalorder %s290, 7
        %s292 = scalar_select %p291, %s290, 7
        %s293 = smul.addr %s292, 8
        %s294 = scalar_lea.vmem %s0, %s293
        %s295 = smul.u32 4, %s22
        %s296 = smul.u32 4, %s22
        %v298 = vld [vmem:[%s294] sm:$0xff]
        %v299 = vld [vmem:[%s294 + $0x8] sm:$0xff]
        %v300 = vld [vmem:[%s294 + $0x10] sm:$0xff]
        %v301 = vld [vmem:[%s294 + $0x18] sm:$0xff]
        %v302 = vpack.c.bf16 %v299, %v298
        %v303 = vpack.c.bf16 %v301, %v300
        %v304 = vld [vmem:[%s1] sm:$0xf]
        %v305 = vld [vmem:[%s1 + $0x4] sm:$0xf]
        %v306 = vld [vmem:[%s2] sm:$0x1]
        %v308 = vperm.slane %v306, 0
        %v312 = vunpack.c.l.b16 %v304
        %v313 = vunpack.c.l.b16 %v305
        %v314 = vpack.c.b16 %v313, %v312
        %vm316 = vcmask 130048
        %v318 = vsel %vm316, %v302, 0
        %v321 = vsel %vm316, %v303, 0
        %323 = vmatpush.bf16.msra.mxu0 0
        %324 = vmatpush.bf16.msra.mxu0 0
        %325 = vmatpush.bf16.msra.mxu0 0
        %326 = vmatpush.bf16.msra.mxu0 0
        %327 = vmatpush.bf16.msra.mxu0 0
        %328 = vmatpush.bf16.msra.mxu0 0
        %329 = vmatpush.bf16.msra.mxu0 0
        %330 = vmatpush.bf16.msra.mxu0 %v314
        %331 = vmatmul.bf16.gmra.mxu0 %v318
        %v332 = vpop.f32.mrf.mxu0
        %v333 = vadd.f32 %v308, %v332
        %v334 = vpop.f32.mrf.mxu0
        %v335 = vadd.f32 %v308, %v334
        %336 = vmatmul.bf16.gmra.mxu0 %v321
        %v337 = vpop.f32.mrf.mxu0
        %v338 = vadd.f32 %v308, %v337
        %v339 = vpop.f32.mrf.mxu0
        %v340 = vadd.f32 %v308, %v339
        %341 = vdwg.mxu0
        %v342 = vmax.f32 %v333, 0.0
        %v343 = vmax.f32 %v335, 0.0
        %v344 = vmax.f32 %v338, 0.0
        %v345 = vmax.f32 %v340, 0.0
        %v346 = vpack.c.bf16 %v343, %v342
        %v347 = vpack.c.bf16 %v345, %v344
        %v348 = vld [vmem:[%s3] sm:$0xf]
        %v349 = vld [vmem:[%s3 + $0x4] sm:$0xf]
        %v350 = vld [vmem:[%s3 + $0x8] sm:$0xf]
        %v351 = vld [vmem:[%s3 + $0xc] sm:$0xf]
        %v352 = vld [vmem:[%s3 + $0x10] sm:$0xf]
        %v353 = vld [vmem:[%s3 + $0x14] sm:$0xf]
        %v354 = vld [vmem:[%s3 + $0x18] sm:$0xf]
        %v355 = vld [vmem:[%s3 + $0x1c] sm:$0xf]
        %v356 = vld [vmem:[%s3 + $0x20] sm:$0xf]
        %v357 = vld [vmem:[%s3 + $0x24] sm:$0xf]
        %v358 = vld [vmem:[%s3 + $0x28] sm:$0xf]
        %v359 = vld [vmem:[%s3 + $0x2c] sm:$0xf]
        %v360 = vld [vmem:[%s3 + $0x30] sm:$0xf]
        %v361 = vld [vmem:[%s3 + $0x34] sm:$0xf]
        %v362 = vld [vmem:[%s3 + $0x38] sm:$0xf]
        %v363 = vld [vmem:[%s3 + $0x3c] sm:$0xf]
        %v364 = vld [vmem:[%s4] sm:$0x1]
        %v366 = vperm.slane %v364, 0
        %v384 = vunpack.c.l.b16 %v348
        %v385 = vunpack.c.l.b16 %v349
        %v386 = vunpack.c.l.b16 %v350
        %v387 = vunpack.c.l.b16 %v351
        %v388 = vunpack.c.l.b16 %v352
        %v389 = vunpack.c.l.b16 %v353
        %v390 = vunpack.c.l.b16 %v354
        %v391 = vunpack.c.l.b16 %v355
        %v392 = vunpack.c.l.b16 %v356
        %v393 = vunpack.c.l.b16 %v357
        %v394 = vunpack.c.l.b16 %v358
        %v395 = vunpack.c.l.b16 %v359
        %v396 = vunpack.c.l.b16 %v360
        %v397 = vunpack.c.l.b16 %v361
        %v398 = vunpack.c.l.b16 %v362
        %v399 = vunpack.c.l.b16 %v363
        %v400 = vpack.c.b16 %v385, %v384
        %v401 = vpack.c.b16 %v387, %v386
        %v402 = vpack.c.b16 %v389, %v388
        %v403 = vpack.c.b16 %v391, %v390
        %v404 = vpack.c.b16 %v393, %v392
        %v405 = vpack.c.b16 %v395, %v394
        %v406 = vpack.c.b16 %v397, %v396
        %v407 = vpack.c.b16 %v399, %v398
        %416 = vmatpush.bf16.msra.mxu0 %v407
        %417 = vmatpush.bf16.msra.mxu0 %v406
        %418 = vmatpush.bf16.msra.mxu0 %v405
        %419 = vmatpush.bf16.msra.mxu0 %v404
        %420 = vmatpush.bf16.msra.mxu0 %v403
        %421 = vmatpush.bf16.msra.mxu0 %v402
        %422 = vmatpush.bf16.msra.mxu0 %v401
        %423 = vmatpush.bf16.msra.mxu0 %v400
        %424 = vmatmul.bf16.gmra.mxu0 %v346
        %v425 = vpop.f32.mrf.mxu0
        %v426 = vadd.f32 %v366, %v425
        %v427 = vpop.f32.mrf.mxu0
        %v428 = vadd.f32 %v366, %v427
        %429 = vmatmul.bf16.gmra.mxu0 %v347
        %v430 = vpop.f32.mrf.mxu0
        %v431 = vadd.f32 %v366, %v430
        %v432 = vpop.f32.mrf.mxu0
        %v433 = vadd.f32 %v366, %v432
        %434 = vdwg.mxu0
        %v435 = vmax.f32 %v426, 0.0
        %v436 = vmax.f32 %v428, 0.0
        %v437 = vmax.f32 %v431, 0.0
        %v438 = vmax.f32 %v433, 0.0
        %v439 = vpack.c.bf16 %v436, %v435
        %v440 = vpack.c.bf16 %v438, %v437
        %v441 = vld [vmem:[#allocation2] sm:$0xf]
        %v442 = vld [vmem:[#allocation2 + $0x4] sm:$0xf]
        %v443 = vld [vmem:[#allocation2 + $0x8] sm:$0xf]
        %v444 = vld [vmem:[#allocation2 + $0xc] sm:$0xf]
        %v445 = vld [vmem:[#allocation2 + $0x10] sm:$0xf]
        %v446 = vld [vmem:[#allocation2 + $0x14] sm:$0xf]
        %v447 = vld [vmem:[#allocation2 + $0x18] sm:$0xf]
        %v448 = vld [vmem:[#allocation2 + $0x1c] sm:$0xf]
        %v449 = vld [vmem:[#allocation2 + $0x20] sm:$0xf]
        %v450 = vld [vmem:[#allocation2 + $0x24] sm:$0xf]
        %v451 = vld [vmem:[#allocation2 + $0x28] sm:$0xf]
        %v452 = vld [vmem:[#allocation2 + $0x2c] sm:$0xf]
        %v453 = vld [vmem:[#allocation2 + $0x30] sm:$0xf]
        %v454 = vld [vmem:[#allocation2 + $0x34] sm:$0xf]
        %v455 = vld [vmem:[#allocation2 + $0x38] sm:$0xf]
        %v456 = vld [vmem:[#allocation2 + $0x3c] sm:$0xf]
        %v457 = vld [vmem:[%s6] sm:$0x1]
        %v459 = vperm.slane %v457, 0
        %v477 = vunpack.c.l.b16 %v441
        %v478 = vunpack.c.l.b16 %v442
        %v479 = vunpack.c.l.b16 %v443
        %v480 = vunpack.c.l.b16 %v444
        %v481 = vunpack.c.l.b16 %v445
        %v482 = vunpack.c.l.b16 %v446
        %v483 = vunpack.c.l.b16 %v447
        %v484 = vunpack.c.l.b16 %v448
        %v485 = vunpack.c.l.b16 %v449
        %v486 = vunpack.c.l.b16 %v450
        %v487 = vunpack.c.l.b16 %v451
        %v488 = vunpack.c.l.b16 %v452
        %v489 = vunpack.c.l.b16 %v453
        %v490 = vunpack.c.l.b16 %v454
        %v491 = vunpack.c.l.b16 %v455
        %v492 = vunpack.c.l.b16 %v456
        %v493 = vpack.c.b16 %v478, %v477
        %v494 = vpack.c.b16 %v480, %v479
        %v495 = vpack.c.b16 %v482, %v481
        %v496 = vpack.c.b16 %v484, %v483
        %v497 = vpack.c.b16 %v486, %v485
        %v498 = vpack.c.b16 %v488, %v487
        %v499 = vpack.c.b16 %v490, %v489
        %v500 = vpack.c.b16 %v492, %v491
        %509 = vmatpush.bf16.msra.mxu0 %v500
        %510 = vmatpush.bf16.msra.mxu0 %v499
        %511 = vmatpush.bf16.msra.mxu0 %v498
        %512 = vmatpush.bf16.msra.mxu0 %v497
        %513 = vmatpush.bf16.msra.mxu0 %v496
        %514 = vmatpush.bf16.msra.mxu0 %v495
        %515 = vmatpush.bf16.msra.mxu0 %v494
        %516 = vmatpush.bf16.msra.mxu0 %v493
        %517 = vmatmul.bf16.gmra.mxu0 %v439
        %v518 = vpop.f32.mrf.mxu0
        %v519 = vadd.f32 %v459, %v518
        %v520 = vpop.f32.mrf.mxu0
        %v521 = vadd.f32 %v459, %v520
        %522 = vmatmul.bf16.gmra.mxu0 %v440
        %v523 = vpop.f32.mrf.mxu0
        %v524 = vadd.f32 %v459, %v523
        %v525 = vpop.f32.mrf.mxu0
        %v526 = vadd.f32 %v459, %v525
        %527 = vdwg.mxu0
        %528 = vst [vmem:[%s289] sm:$0xff] %v519
        %529 = vst [vmem:[%s289 + $0x8] sm:$0xff] %v521
        %530 = vst [vmem:[%s289 + $0x10] sm:$0xff] %v524
        %531 = vst [vmem:[%s289 + $0x18] sm:$0xff] %v526
        %s532 = sand.u32 %s182, 1
        %s533 = scalar_lea.sflag [#allocation4], %s532
        %s534 = sand.u32 %s182, 1
        %s535 = smul.addr %s534, 32
        %s536 = scalar_lea.vmem [#allocation5], %s535
        // Predicated region
        $region53: #{tpu_custom_call.1} parent=47 // pred_check
          %p537 = pneg %p192
        $region54: #{tpu_custom_call.1} parent=47 // pred_check_branch
          %539 = sbr.rel (%p537) target = $region56
        $region55: #{tpu_custom_call.1} parent=47 // pred_region
          %s540 = smul.u32 4, %s22
          %542 = vsyncadd %s533, 0
          %s543 = smul.addr %s540, 8
          %s544 = scalar_lea.hbm %s7, %s543
          %s545 = sshll.u32 %s536, 4
          %s546 = int_to_ptr.vmem [resolvable:$true] %s545
          %s547 = sshll.u32 %s544, 4
          %s548 = int_to_ptr.hbm [resolvable:$true] %s547
          %553 = dma.vmem_to_hbm [thread:$0]  %s546, 512, %s548, %s533, 128, 128, 8
        $region56: #{tpu_custom_call.1} parent=47 // pred_fallthru
          _
      $region48: #{tpu_custom_call.1} parent=5 // pred_fallthru
        _
      %p554 = scmp.le.s32.totalorder 2, %s17
      // Predicated region
      $region57: #{tpu_custom_call.1} parent=5 // pred_check
        %p555 = pneg %p554
      $region58: #{tpu_custom_call.1} parent=5 // pred_check_branch
        %557 = sbr.rel (%p555) target = $region60
      $region59: #{tpu_custom_call.1} parent=5 // pred_region
        %s558 = ssub.s32 %s17, 2
        // Predicated region
        $region61: #{tpu_custom_call.1} parent=59 // pred_check
          %p559 = pneg %p198
        $region62: #{tpu_custom_call.1} parent=59 // pred_check_branch
          %561 = sbr.rel (%p559) target = $region64
        $region63: #{tpu_custom_call.1} parent=59 // pred_region
          %s562 = sand.u32 %s183, 1
          %s563 = scalar_lea.sflag [#allocation4], %s562
          %s564 = sand.u32 %s183, 1
          %s565 = smul.addr %s564, 32
          %s566 = scalar_lea.vmem [#allocation5], %s565
          %568 = dma.done %s563, 512
        $region64: #{tpu_custom_call.1} parent=59 // pred_fallthru
          _
      $region60: #{tpu_custom_call.1} parent=5 // pred_fallthru
        _
    $region6: #{tpu_custom_call.1} parent=1 // loop_footer
      %s21 = sadd.s32 1, %s17
    $region7: #{tpu_custom_call.1} parent=1 // loop_footer_branch
      %16 = sbr.rel target = $region3
    $region8: #{tpu_custom_call.1} parent=1 // loop_exit
      _
    %569 = vsyncpa [#allocation3], 1
    %s570 = scalar_lea.sflag [#allocation3], 1
    %571 = vsyncpa %s570, 1
    %572 = vsyncpa [#allocation4], 1
    %s573 = scalar_lea.sflag [#allocation4], 1
    %574 = vsyncpa %s573, 1

</llo_original>
